<compile_context>
chip_gen: v7x
topology: tpu7x:2x2x1
jax: 0.10.0
libtpu: 0.0.40
codegen_flags: <defaults>
</compile_context>

<pallas_src>
import functools

import jax
import jax.numpy as jnp
from jax.experimental import pallas as pl
from jax.experimental.pallas import tpu as pltpu


def _round_up(x: int, m: int) -> int:
    return ((x + m - 1) // m) * m


def _acc_k_kernel(logits_ref, targets_ref, out_ref, *, k: int, c_total: int,
                  n_total: int, tile_n: int, blocks_per_core: int):
    c = pl.program_id(0)   # core-split axis ("parallel")
    i = pl.program_id(1)   # row-block axis ("arbitrary", accumulated)

    @pl.when(i == 0)
    def _():
        out_ref[...] = jnp.zeros_like(out_ref)

    lb = c * blocks_per_core + i   # logical (unclamped) block index

    # Skip compute entirely for duplicated clamped boundary blocks.
    @pl.when(lb * tile_n < n_total)
    def _():
        x = logits_ref[...]                                       # (TN, C), native dtype
        tgt = targets_ref[...]                                    # (TN, 1) int32, 1-based

        # scalar range test instead of a reduce over C
        valid = jnp.logical_and(tgt >= 1, tgt <= c_total)         # (TN, 1)

        col = jax.lax.broadcasted_iota(jnp.int32, x.shape, 1)     # (TN, C)
        tmask = col == (tgt - 1)                                  # one-hot of target class

        # logit of the target class (exactly one element selected when valid)
        x_t = jnp.sum(jnp.where(tmask, x, jnp.zeros_like(x)), axis=-1, keepdims=True)

        # rank test: hit iff fewer than k classes are strictly better than the target
        n_greater = jnp.sum((x > x_t).astype(jnp.int32), axis=-1, keepdims=True)

        # mask rows past N (partial last block)
        row = lb * tile_n + jax.lax.broadcasted_iota(jnp.int32, (tile_n, 1), 0)
        in_range = row < n_total

        hit = jnp.logical_and(jnp.logical_and(valid, n_greater < k), in_range)
        # int32 accumulation is exact; scalar is broadcast to the lane-dense block.
        out_ref[...] += jnp.sum(hit.astype(jnp.int32))


def accuracy_at_k(logits: jax.Array, targets: jax.Array, k: int,
                  *, tile_n: int | None = None, num_cores: int = 1):
    """Acc@K = (#targets found within top-k of softmax(logits)) / N."""
    N, C = logits.shape
    targets = jnp.asarray(targets).reshape(-1)          # handles (N,) and (N, 1)
    tgt2d = targets.reshape(N, 1).astype(jnp.int32)

    itemsize = jnp.dtype(logits.dtype).itemsize
    sub = max(8, 32 // itemsize)                          # sublane multiple: 8 f32 / 16 bf16 / 32 i8

    if tile_n is None:
        # Byte-targeted tiles: ~6 MiB per (logits + lane-padded targets) buffer,
        # double-buffered (~12 MiB), safely under the 16/32 MiB scoped VMEM on
        # every generation (v5e/v6e/v7x).
        budget = 6 * 1024 * 1024
        per_row = C * itemsize + 128 * 4                  # targets block pads to 128 int32 lanes
        t = (budget // per_row) // sub * sub
        t = max(sub, t)
        tile_n = min(t, _round_up(N, sub))
    else:
        tile_n = max(sub, _round_up(tile_n, sub))

    n_blocks = pl.cdiv(N, tile_n)
    blocks_per_core = pl.cdiv(n_blocks, num_cores)

    def _block_idx(c, i):
        # Clamp so every DMA window stays within the array; clamped duplicates
        # are skipped by pl.when inside the kernel (no compute, no double count).
        return jnp.minimum(c * blocks_per_core + i, n_blocks - 1)

    kernel = functools.partial(_acc_k_kernel, k=k, c_total=C, n_total=N,
                               tile_n=tile_n, blocks_per_core=blocks_per_core)

    partials = pl.pallas_call(
        kernel,
        out_shape=jax.ShapeDtypeStruct((num_cores, 8, 128), jnp.int32),
        grid_spec=pltpu.PrefetchScalarGridSpec(
            num_scalar_prefetch=0,
            grid=(num_cores, blocks_per_core),
            in_specs=[
                pl.BlockSpec((tile_n, C), lambda c, i: (_block_idx(c, i), 0)),  # logits
                pl.BlockSpec((tile_n, 1), lambda c, i: (_block_idx(c, i), 0)),  # targets
            ],
            # lane/sublane-clean per-core partial hit count (every element holds the count)
            out_specs=pl.BlockSpec((1, 8, 128), lambda c, i: (c, 0, 0)),
        ),
        compiler_params=pltpu.CompilerParams(
            dimension_semantics=("parallel", "arbitrary"),
            vmem_limit_bytes=32 * 1024 * 1024,
        ),
    )(logits, tgt2d)

    # Finish the mean in the wrapper (one representative element per core).
    hits = jnp.sum(partials[:, 0, 0]).astype(jnp.float32)
    return hits / N


def _reference_acc_k(logits, targets, k):
    probs = jax.nn.softmax(logits.astype(jnp.float32), axis=-1)
    _, top_k = jax.lax.top_k(probs, k)
    top_k = top_k + 1
    hits = jnp.any(top_k == targets.reshape(-1)[:, None], axis=-1)
    return hits.astype(jnp.float32).mean()


if __name__ == "__main__":
    K = 3
    N, C = 16, 32  # small shapes: 16 test samples, 32 classes

    key = jax.random.PRNGKey(0)
    k_logits, k_tgt = jax.random.split(key)
    logits = jax.random.normal(k_logits, (N, C), dtype=jnp.float32)
    # 1-based ground-truth labels in [1, C] (module compares against top_k + 1)
    targets = jax.random.randint(k_tgt, (N,), minval=1, maxval=C + 1, dtype=jnp.int32)

    acc = jax.block_until_ready(accuracy_at_k(logits, targets, K))
    ref = jax.block_until_ready(_reference_acc_k(logits, targets, K))
    assert jnp.allclose(acc, ref, atol=1e-6), (acc, ref)

    # uneven / multi-block path (N not divisible by tile_n)
    N2 = 53
    logits2 = jax.random.normal(jax.random.PRNGKey(1), (N2, C), dtype=jnp.float32)
    targets2 = jax.random.randint(jax.random.PRNGKey(2), (N2,), 1, C + 1, jnp.int32)
    acc2 = jax.block_until_ready(accuracy_at_k(logits2, targets2, K, tile_n=16))
    ref2 = jax.block_until_ready(_reference_acc_k(logits2, targets2, K))
    assert jnp.allclose(acc2, ref2, atol=1e-6), (acc2, ref2)

    # optional core-split path with a clamped (skipped) duplicate boundary block
    acc3 = jax.block_until_ready(accuracy_at_k(logits2, targets2, K, tile_n=24, num_cores=2))
    assert jnp.allclose(acc3, ref2, atol=1e-6), (acc3, ref2)

    print("KERNEL_OK")
</pallas_src>

<mosaic_0001>
module attributes {stable_mosaic.version = 11 : i64} {
  func.func @_acc_k_kernel(%arg0: i32, %arg1: i32, %arg2: memref<16x32xf32, #tpu.memory_space<vmem>>, %arg3: memref<16x1xi32, #tpu.memory_space<vmem>>, %arg4: memref<1x8x128xi32, #tpu.memory_space<vmem>>) attributes {dimension_semantics = [#tpu.dimension_semantics<parallel>, #tpu.dimension_semantics<arbitrary>], iteration_bounds = array<i64: 1, 1>, scalar_prefetch = 0 : i64, scratch_operands = 0 : i64, tpu.core_type = #tpu.core_type<tc>, window_params = [{transform_indices = @transform_0, window_bounds = array<i64: 16, 32>}, {transform_indices = @transform_1, window_bounds = array<i64: 16, 1>}, {transform_indices = @transform_2, window_bounds = array<i64: 1, 8, 128>}]} {
    %c0_i32 = arith.constant 0 : i32
    %0 = arith.cmpi eq, %arg1, %c0_i32 : i32
    %1 = arith.extui %0 : i1 to i32
    %c0_i32_0 = arith.constant 0 : i32
    %2 = arith.cmpi ne, %1, %c0_i32_0 : i32
    scf.if %2 {
      %c0_i32_3 = arith.constant 0 : i32
      %9 = vector.broadcast %c0_i32_3 : i32 to vector<1x8x128xi32>
      %c0 = arith.constant 0 : index
      %c0_4 = arith.constant 0 : index
      %c0_5 = arith.constant 0 : index
      %10 = vector.load %arg4[%c0, %c0_4, %c0_5] : memref<1x8x128xi32, #tpu.memory_space<vmem>>, vector<1x8x128xi32>
      tpu.vector_store %arg4[%c0, %c0_4, %c0_5], %9 {strides = array<i32>} : memref<1x8x128xi32, #tpu.memory_space<vmem>>, vector<1x8x128xi32>,
    } else {
    }
    %c1_i32 = arith.constant 1 : i32
    %3 = arith.muli %arg0, %c1_i32 : i32
    %4 = arith.addi %3, %arg1 : i32
    %c16_i32 = arith.constant 16 : i32
    %5 = arith.muli %4, %c16_i32 : i32
    %c16_i32_1 = arith.constant 16 : i32
    %6 = arith.cmpi slt, %5, %c16_i32_1 : i32
    %7 = arith.extui %6 : i1 to i32
    %c0_i32_2 = arith.constant 0 : i32
    %8 = arith.cmpi ne, %7, %c0_i32_2 : i32
    scf.if %8 {
      %c0 = arith.constant 0 : index
      %c0_3 = arith.constant 0 : index
      %9 = vector.load %arg2[%c0, %c0_3] : memref<16x32xf32, #tpu.memory_space<vmem>>, vector<16x32xf32>
      %c0_4 = arith.constant 0 : index
      %c0_5 = arith.constant 0 : index
      %10 = vector.load %arg3[%c0_4, %c0_5] : memref<16x1xi32, #tpu.memory_space<vmem>>, vector<16x1xi32>
      %c1_i32_6 = arith.constant 1 : i32
      %11 = vector.broadcast %c1_i32_6 : i32 to vector<16x1xi32>
      %12 = arith.cmpi sge, %10, %11 : vector<16x1xi32>
      %c32_i32 = arith.constant 32 : i32
      %13 = vector.broadcast %c32_i32 : i32 to vector<16x1xi32>
      %14 = arith.cmpi sle, %10, %13 : vector<16x1xi32>
      %15 = arith.andi %12, %14 : vector<16x1xi1>
      %16 = tpu.iota {dimensions = array<i32: 1>} : vector<16x32xi32>
      %c1_i32_7 = arith.constant 1 : i32
      %17 = vector.broadcast %c1_i32_7 : i32 to vector<16x1xi32>
      %18 = arith.subi %10, %17 : vector<16x1xi32>
      %19 = vector.broadcast %18 : vector<16x1xi32> to vector<16x32xi32>
      %20 = arith.cmpi eq, %16, %19 : vector<16x32xi32>
      %cst = arith.constant 0.000000e+00 : f32
      %21 = vector.broadcast %cst : f32 to vector<16x32xf32>
      %22 = arith.select %20, %9, %21 : vector<16x32xi1>, vector<16x32xf32>
      %cst_8 = arith.constant dense<0.000000e+00> : vector<16xf32>
      %23 = vector.multi_reduction <add>, %22, %cst_8 [1] : vector<16x32xf32> to vector<16xf32>
      %24 = vector.shape_cast %23 : vector<16xf32> to vector<16x1xf32>
      %25 = vector.broadcast %24 : vector<16x1xf32> to vector<16x32xf32>
      %26 = arith.cmpf ogt, %9, %25 : vector<16x32xf32>
      %27 = arith.extui %26 : vector<16x32xi1> to vector<16x32xi32>
      %cst_9 = arith.constant dense<0> : vector<16xi32>
      %28 = vector.multi_reduction <add>, %27, %cst_9 [1] : vector<16x32xi32> to vector<16xi32>
      %29 = vector.shape_cast %28 : vector<16xi32> to vector<16x1xi32>
      %c16_i32_10 = arith.constant 16 : i32
      %30 = arith.muli %4, %c16_i32_10 : i32
      %31 = tpu.iota {dimensions = array<i32: 0>} : vector<16x1xi32>
      %32 = vector.broadcast %30 : i32 to vector<16x1xi32>
      %33 = arith.addi %32, %31 : vector<16x1xi32>
      %c16_i32_11 = arith.constant 16 : i32
      %34 = vector.broadcast %c16_i32_11 : i32 to vector<16x1xi32>
      %35 = arith.cmpi slt, %33, %34 : vector<16x1xi32>
      %c3_i32 = arith.constant 3 : i32
      %36 = vector.broadcast %c3_i32 : i32 to vector<16x1xi32>
      %37 = arith.cmpi slt, %29, %36 : vector<16x1xi32>
      %38 = arith.andi %15, %37 : vector<16x1xi1>
      %39 = arith.andi %38, %35 : vector<16x1xi1>
      %c0_12 = arith.constant 0 : index
      %c0_13 = arith.constant 0 : index
      %c0_14 = arith.constant 0 : index
      %40 = vector.load %arg4[%c0_12, %c0_13, %c0_14] : memref<1x8x128xi32, #tpu.memory_space<vmem>>, vector<1x8x128xi32>
      %41 = arith.extui %39 : vector<16x1xi1> to vector<16x1xi32>
      %42 = vector.shape_cast %41 : vector<16x1xi32> to vector<1x16x1xi32>
      %cst_15 = arith.constant dense<0> : vector<1xi32>
      %43 = vector.multi_reduction <add>, %42, %cst_15 [1, 2] : vector<1x16x1xi32> to vector<1xi32>
      %44 = vector.shape_cast %43 : vector<1xi32> to vector<1x1x1xi32>
      %45 = vector.extract %44[0, 0, 0] : i32 from vector<1x1x1xi32>
      %46 = vector.broadcast %45 : i32 to vector<1x8x128xi32>
      %47 = arith.addi %40, %46 : vector<1x8x128xi32>
      %c0_16 = arith.constant 0 : index
      %c0_17 = arith.constant 0 : index
      %c0_18 = arith.constant 0 : index
      %48 = vector.load %arg4[%c0_16, %c0_17, %c0_18] : memref<1x8x128xi32, #tpu.memory_space<vmem>>, vector<1x8x128xi32>
      tpu.vector_store %arg4[%c0_16, %c0_17, %c0_18], %47 {strides = array<i32>} : memref<1x8x128xi32, #tpu.memory_space<vmem>>, vector<1x8x128xi32>,
    } else {
    }
    return
  }
  func.func @transform_0(%arg0: i32, %arg1: i32) -> (i32, i32) {
    %c1_i32 = arith.constant 1 : i32
    %0 = arith.muli %arg0, %c1_i32 : i32
    %1 = arith.addi %0, %arg1 : i32
    %c0_i32 = arith.constant 0 : i32
    %2 = arith.minsi %1, %c0_i32 : i32
    %c0_i32_0 = arith.constant 0 : i32
    %c0_i32_1 = arith.constant 0 : i32
    return %2, %c0_i32_0 : i32, i32
  }
  func.func @transform_1(%arg0: i32, %arg1: i32) -> (i32, i32) {
    %c1_i32 = arith.constant 1 : i32
    %0 = arith.muli %arg0, %c1_i32 : i32
    %1 = arith.addi %0, %arg1 : i32
    %c0_i32 = arith.constant 0 : i32
    %2 = arith.minsi %1, %c0_i32 : i32
    %c0_i32_0 = arith.constant 0 : i32
    %c0_i32_1 = arith.constant 0 : i32
    return %2, %c0_i32_0 : i32, i32
  }
  func.func @transform_2(%arg0: i32, %arg1: i32) -> (i32, i32, i32) {
    %c0_i32 = arith.constant 0 : i32
    %c0_i32_0 = arith.constant 0 : i32
    %c0_i32_1 = arith.constant 0 : i32
    return %arg0, %c0_i32, %c0_i32_0 : i32, i32, i32
  }
}

</mosaic_0001>

<llo_original>
// kernel: tpu_custom_call.1
$region0: #{tpu_custom_call.1}
  #allocation0 [shape = 'u32[]', space=smem, size = 0x4, offset = 0x4, fixed_abs, tag = 'smem constant byte address 0x4 - core index']
  #allocation1 [shape = 'u32[144,128]{1,0:T(1,128)}', space=vmem, size = 0x12000, scoped, tag = 'internal scratch']
  %s0 = inlined_call_operand.vmem [shape: f32[16,32], index: 0, kind: input, shape index: {}]
  %s1 = inlined_call_operand.vmem [shape: s32[16,1], index: 1, kind: input, shape index: {}]
  %s2 = inlined_call_operand.hbm [shape: s32[1,8,128], index: 2, kind: output, shape index: {}]
  %s3 = sld [smem:[#allocation0]]
  $region26: #{tpu_custom_call.1} parent=0
    _
  %s5 = ssub.s32 1, %s3
  %s6 = scalar_select 0, %s5, %s3
  $region1: #{tpu_custom_call.1} parent=0
    #allocation2 [shape = 'u8[4096]{0}', space=vmem, size = 0x1000, scoped, tag = 'output window, operand 0, single buffered']
    #allocation3 [shape = 's32[1]{0}', space=sflag, size = 0x4, scoped, tag = 'scoped memory for tpu_custom_call.1']
    %7 = vsyncpa [#allocation3], 0
    // Predicated region
    $region2: #{tpu_custom_call.1} parent=1 // pred_check
      _
    $region3: #{tpu_custom_call.1} parent=1 // pred_check_branch
      %9 = sbr.rel (0) target = $region5
    $region4: #{tpu_custom_call.1} parent=1 // pred_region
      %s10 = sadd.s32 0, 0
      %p11 = scmp.lt.s32.totalorder %s10, 0
      %s12 = scalar_select %p11, %s10, 0
      %s13 = smul.u32 2, %s12
      %p14 = scmp.lt.s32.totalorder %s13, 1
      %s15 = scalar_select %p14, %s13, 1
      %s16 = smul.addr %s15, 8
      %s17 = scalar_lea.vmem %s0, %s16
      %s18 = sadd.s32 0, 0
      %p19 = scmp.lt.s32.totalorder %s18, 0
      %s20 = scalar_select %p19, %s18, 0
      %s21 = smul.u32 2, %s20
    $region5: #{tpu_custom_call.1} parent=1 // pred_fallthru
      _
    // Predicated region
    $region6: #{tpu_custom_call.1} parent=1 // pred_check
      _
    $region7: #{tpu_custom_call.1} parent=1 // pred_check_branch
      %23 = sbr.rel (0) target = $region9
    $region8: #{tpu_custom_call.1} parent=1 // pred_region
      %s24 = sadd.s32 0, 0
      %p25 = scmp.lt.s32.totalorder %s24, 0
      %s26 = scalar_select %p25, %s24, 0
      %s27 = smul.u32 2, %s26
      %p28 = scmp.lt.s32.totalorder %s27, 1
      %s29 = scalar_select %p28, %s27, 1
      %s30 = smul.addr %s29, 8
      %s31 = scalar_lea.vmem %s1, %s30
      %s32 = sadd.s32 0, 0
      %p33 = scmp.lt.s32.totalorder %s32, 0
      %s34 = scalar_select %p33, %s32, 0
      %s35 = smul.u32 2, %s34
    $region9: #{tpu_custom_call.1} parent=1 // pred_fallthru
      _
    %s36 = sadd.s32 0, 0
    %p37 = scmp.lt.s32.totalorder %s36, 0
    %s38 = scalar_select %p37, %s36, 0
    %s39 = smul.u32 2, %s38
    %p40 = scmp.lt.s32.totalorder %s39, 1
    %s41 = scalar_select %p40, %s39, 1
    %s42 = smul.addr %s41, 8
    %s43 = scalar_lea.vmem %s0, %s42
    %s44 = sadd.s32 0, 0
    %p45 = scmp.lt.s32.totalorder %s44, 0
    %s46 = scalar_select %p45, %s44, 0
    %s47 = smul.u32 2, %s46
    %p48 = scmp.lt.s32.totalorder %s47, 1
    %s49 = scalar_select %p48, %s47, 1
    %s50 = smul.addr %s49, 8
    %s51 = scalar_lea.vmem %s1, %s50
    %s52 = sadd.s32 0, 0
    %p53 = scmp.lt.s32.totalorder %s52, 0
    %s54 = scalar_select %p53, %s52, 0
    %s55 = smul.u32 2, %s54
    %p56 = scmp.lt.s32.totalorder %s55, 1
    %s57 = scalar_select %p56, %s55, 1
    %s58 = smul.addr %s57, 8
    %s59 = scalar_lea.vmem %s0, %s58
    %s60 = sadd.s32 0, 0
    %p61 = scmp.lt.s32.totalorder %s60, 0
    %s62 = scalar_select %p61, %s60, 0
    %s63 = smul.u32 2, %s62
    %s64 = sadd.s32 0, 0
    %p65 = scmp.lt.s32.totalorder %s64, 0
    %s66 = scalar_select %p65, %s64, 0
    %s67 = smul.u32 2, %s66
    %p68 = scmp.lt.s32.totalorder %s67, 1
    %s69 = scalar_select %p68, %s67, 1
    %s70 = smul.addr %s69, 8
    %s71 = scalar_lea.vmem %s1, %s70
    %s72 = sadd.s32 0, 0
    %p73 = scmp.lt.s32.totalorder %s72, 0
    %s74 = scalar_select %p73, %s72, 0
    %s75 = smul.u32 2, %s74
    %p76 = scmp.eq.s32.totalorder 0, 0
    // Predicated region
    $region10: #{tpu_custom_call.1} parent=1 // pred_check
      %p77 = pneg %p76
    $region11: #{tpu_custom_call.1} parent=1 // pred_check_branch
      %79 = sbr.rel (%p77) target = $region13
    $region12: #{tpu_custom_call.1} parent=1 // pred_region
      %80 = vst [vmem:[#allocation2] sm:$0xff] 0
    $region13: #{tpu_custom_call.1} parent=1 // pred_fallthru
      _
    %s81 = sadd.s32 0, 0
    %s82 = smul.u32 %s81, 16
    %p83 = scmp.lt.s32.totalorder %s82, 16
    // Predicated region
    $region14: #{tpu_custom_call.1} parent=1 // pred_check
      %p84 = pneg %p83
    $region15: #{tpu_custom_call.1} parent=1 // pred_check_branch
      %86 = sbr.rel (%p84) target = $region17
    $region16: #{tpu_custom_call.1} parent=1 // pred_region
      %v87 = vld [vmem:[%s59] sm:$0xff]
      %v88 = vld [vmem:[%s59 + $0x8] sm:$0xff]
      %v89 = vld [vmem:[%s71] sm:$0xff]
      %v90 = vld [vmem:[%s71 + $0x8] sm:$0xff]
      %vm91 = vcmp.ge.s32.totalorder %v89, 1
      %vm92 = vcmp.ge.s32.totalorder %v90, 1
      %vm93 = vcmp.le.s32.totalorder %v89, 32
      %vm94 = vcmp.le.s32.totalorder %v90, 32
      %vm95 = vmand %vm91, %vm93
      %vm96 = vmand %vm92, %vm94
      %v97 = vlaneseq
      %v98 = vand.u32 %v97, 127
      %v99 = vsub.s32 %v89, 1
      %v100 = vsub.s32 %v90, 1
      %101 = vset.pattern.permute.xlu0 0
      %102 = vperm.xlu0 %101, %v99
      %v103 = vpop.permute.xlu0 %102
      %104 = vset.pattern.permute.xlu0 0
      %105 = vperm.xlu0 %104, %v100
      %v106 = vpop.permute.xlu0 %105
      %vm107 = vcmp.eq.s32.totalorder %v98, %v103
      %vm108 = vcmp.eq.s32.totalorder %v98, %v106
      %v109 = vsel %vm107, %v87, 0.0
      %v110 = vsel %vm108, %v88, 0.0
      %vm111 = vcmask 261120
      %v112 = vsel %vm111, %v109, 0.0
      %113 = vadd.xlane.f32.xlu0 %v112
      %v114 = vpop.xlane.xlu0 %113
      %v115 = vsel %vm111, %v110, 0.0
      %116 = vadd.xlane.f32.xlu0 %v115
      %v117 = vpop.xlane.xlu0 %116
      %vm118 = vcmp.gt.f32.partialorder %v87, %v114
      %vm119 = vcmp.gt.f32.partialorder %v88, %v117
      %v120 = vsel %vm118, 1, 0
      %v121 = vsel %vm119, 1, 0
      %v122 = vsel %vm111, %v120, 0
      %v123 = vand.u32 %v122, 65535
      %v124 = vshrl.u32 %v122, 16
      %v125 = vcvt.s32.f32 %v123
      %v126 = vcvt.s32.f32 %v124
      %127 = vadd.xlane.f32.xlu0 %v125
      %v128 = vpop.xlane.xlu0 %127
      %129 = vadd.xlane.f32.xlu0 %v126
      %v130 = vpop.xlane.xlu0 %129
      %v131 = vcvt.f32.s32 %v128
      %v132 = vcvt.f32.s32 %v130
      %v133 = vshll.u32 %v132, 16
      %v134 = vadd.s32 %v133, %v131
      %v135 = vsel %vm111, %v121, 0
      %v136 = vand.u32 %v135, 65535
      %v137 = vshrl.u32 %v135, 16
      %v138 = vcvt.s32.f32 %v136
      %v139 = vcvt.s32.f32 %v137
      %140 = vadd.xlane.f32.xlu0 %v138
      %v141 = vpop.xlane.xlu0 %140
      %142 = vadd.xlane.f32.xlu0 %v139
      %v143 = vpop.xlane.xlu0 %142
      %v144 = vcvt.f32.s32 %v141
      %v145 = vcvt.f32.s32 %v143
      %v146 = vshll.u32 %v145, 16
      %v147 = vadd.s32 %v146, %v144
      %v148 = vlaneseq
      %v149 = vshrl.u32 %v148, 7
      %v150 = vadd.s32 %v149, 8
      %v151 = vstv %s82
      %v152 = vadd.s32 %v151, %v149
      %v153 = vadd.s32 %v151, %v150
      %vm154 = vcmp.lt.s32.totalorder %v152, 16
      %vm155 = vcmp.lt.s32.totalorder %v153, 16
      %vm156 = vcmp.lt.s32.totalorder %v134, 3
      %vm157 = vcmp.lt.s32.totalorder %v147, 3
      %vm158 = vmand %vm95, %vm156
      %vm159 = vmand %vm96, %vm157
      %vm160 = vmand %vm158, %vm154
      %vm161 = vmand %vm159, %vm155
      %v162 = vld [vmem:[#allocation2] sm:$0xff]
      %v163 = vsel %vm160, 1, 0
      %v164 = vsel %vm161, 1, 0
      %vm165 = vcmask 7168
      %v166 = vsel %vm165, %v163, 0
      %v167 = vsel %vm165, %v164, 0
      %v168 = vadd.s32 %v166, %v167
      %v169 = vand.u32 %v168, 65535
      %v170 = vshrl.u32 %v168, 16
      %v171 = vcvt.s32.f32 %v169
      %v172 = vcvt.s32.f32 %v170
      %173 = vadd.xlane.f32.xlu0 %v171
      %v174 = vpop.xlane.xlu0 %173
      %175 = vadd.xlane.f32.xlu0 %v172
      %v176 = vpop.xlane.xlu0 %175
      %v177 = vcvt.f32.s32 %v174
      %v178 = vcvt.f32.s32 %v176
      %v179 = vshll.u32 %v178, 16
      %v180 = vadd.s32 %v179, %v177
      %v181 = vrot.slane %v180, 4
      %v182 = vadd.s32 %v180, %v181
      %v183 = vrot.slane %v182, 2
      %v184 = vadd.s32 %v182, %v183
      %v185 = vrot.slane %v184, 1
      %v186 = vadd.s32 %v184, %v185
      %s187 = vtos %v186
      %v188 = vstv %s187
      %v189 = vadd.s32 %v162, %v188
      %190 = vst [vmem:[#allocation2] sm:$0xff] %v189
    $region17: #{tpu_custom_call.1} parent=1 // pred_fallthru
      _
    // Predicated region
    $region18: #{tpu_custom_call.1} parent=1 // pred_check
      _
    $region19: #{tpu_custom_call.1} parent=1 // pred_check_branch
      %192 = sbr.rel (0) target = $region21
    $region20: #{tpu_custom_call.1} parent=1 // pred_region
      %s194 = ssub.s32 128, 128
      %195 = vsyncadd [#allocation3], %s194
      %s197 = sshll.u32 [#allocation2], 4
      %s198 = int_to_ptr.vmem [resolvable:$true] %s197
      %200 = dma.vmem_to_hbm [thread:$0]  %s198, 128, %s2, [#allocation3]
    $region21: #{tpu_custom_call.1} parent=1 // pred_fallthru
      _
    // Predicated region
    $region22: #{tpu_custom_call.1} parent=1 // pred_check
      _
    $region23: #{tpu_custom_call.1} parent=1 // pred_check_branch
      %202 = sbr.rel (0) target = $region25
    $region24: #{tpu_custom_call.1} parent=1 // pred_region
      %203 = dma.done [#allocation3], 128
    $region25: #{tpu_custom_call.1} parent=1 // pred_fallthru
      _
    %204 = vsyncpa [#allocation3], 1

</llo_original>
